<compile_context>
chip_gen: v6e
topology: v6e:2x2x1
jax: 0.10.0
libtpu: 0.0.40
codegen_flags: <defaults>
</compile_context>

<pallas_src>
import functools

import jax
import jax.numpy as jnp
from jax.experimental import pallas as pl
from jax.experimental.pallas import tpu as pltpu


def _round_up(a, b):
    return (a + b - 1) // b * b


def _vmem_capacity_bytes():
    try:
        info = pltpu.get_tpu_info()
        cap = getattr(info, "vmem_capacity_bytes", None)
        if cap:
            return int(cap)
    except Exception:
        pass
    return 128 << 20  # v5e/v6e physical VMEM as a safe fallback


def _plan(M, emb, ff, out_itemsize, *, tm=None, tf=512):
    """Choose padded dims, tiles, residency mode and VMEM limit."""
    emb_p = _round_up(emb, 128)

    # ff tile granularity: multiples of 256 fill the 256x256 MXU on v6e/v7x.
    tf_req = max(128, (int(tf) // 128) * 128)
    if ff >= 256:
        tf_req = max(256, (tf_req // 256) * 256)
    tf_base = min(tf_req, _round_up(ff, 256 if ff >= 256 else 128))
    ff_p = _round_up(ff, tf_base)           # tf_base always divides ff_p

    # Row tile: multiple of 128. Default 512 (>= the v6e/v7x ridge when weights
    # must be streamed).  Keep at least two row tiles when M allows, so the
    # "parallel" axis can be split across v7x's two TensorCores.
    M_r = _round_up(max(M, 1), 128)
    tm_req = 512 if tm is None else tm
    tm_eff = max(128, (int(tm_req) // 128) * 128)
    tm_eff = min(tm_eff, M_r)
    if tm_eff >= M_r and M_r >= 256:
        tm_eff = _round_up(M_r // 2, 128)

    budget = int(_vmem_capacity_bytes() * 0.72)   # headroom for Mosaic scratch

    def vmem_est(tm_e, tf_e, n_wbuf):
        x_tile = tm_e * emb_p * 2                       # bf16 x tile
        o_tile = tm_e * emb_p * out_itemsize            # out tile
        w_bytes = 2 * emb_p * tf_e * 2 * n_wbuf         # W1^T + W2^T slices
        b_bytes = tf_e * 4 * n_wbuf + emb_p * 4 * 2     # b1 slice + b2
        acc = tm_e * emb_p * 4                          # f32 accumulator
        inter = 2 * tm_e * tf_e * 4                     # z1 / a1 live values
        return 2 * (x_tile + o_tile) + w_bytes + b_bytes + acc + inter + (4 << 20)

    resident = vmem_est(tm_eff, ff_p, 1) <= budget
    if resident:
        tf_eff = ff_p
    else:
        tf_eff = tf_base
        while vmem_est(tm_eff, tf_eff, 2) > budget and tf_eff > 256:
            tf_eff //= 2
        while vmem_est(tm_eff, tf_eff, 2) > budget and tm_eff > 128:
            tm_eff = max(128, ((tm_eff // 2) // 128) * 128)
        while vmem_est(tm_eff, tf_eff, 2) > budget and tf_eff > 128:
            tf_eff //= 2

    M_p = _round_up(max(M, 1), tm_eff)
    grid = (M_p // tm_eff, ff_p // tf_eff)
    est = vmem_est(tm_eff, tf_eff, 1 if resident else 2)
    vmem_limit = int(min(budget, max(est, 32 << 20)))

    return dict(emb_p=emb_p, ff_p=ff_p, tm=tm_eff, tf=tf_eff, M_p=M_p,
                grid=grid, resident=resident, vmem_limit=vmem_limit)


def _ffn_kernel(seed_ref, x_ref, w1_ref, b1_ref, w2_ref, b2_ref, o_ref, acc_ref,
                *, dropout_rate, training):
    # x_ref:  (tm, emb_p) bf16     w1_ref: (emb_p, tf) bf16   b1_ref: (1, tf) f32
    # w2_ref: (tf, emb_p) bf16     b2_ref: (1, emb_p)  f32
    # o_ref:  (tm, emb_p)          acc_ref: (tm, emb_p) f32 (resident over ff axis)
    j = pl.program_id(1)
    nj = pl.num_programs(1)

    @pl.when(j == 0)
    def _():
        acc_ref[...] = jnp.zeros_like(acc_ref)

    # linear_1 slice: z1_j = x @ W1^T[:, j] + b1_j  (f32 accumulation on MXU)
    z1 = jnp.dot(x_ref[...], w1_ref[...], preferred_element_type=jnp.float32)
    z1 = z1 + b1_ref[...]

    # relu
    a1 = jnp.maximum(z1, 0.0)

    # dropout (only traced when training=True; eval mode is an exact no-op,
    # matching nn.Dropout.eval()).
    if training and dropout_rate > 0.0:
        if dropout_rate >= 1.0:
            a1 = jnp.zeros_like(a1)
        else:
            keep_prob = 1.0 - float(dropout_rate)
            inv_keep = 1.0 / keep_prob                         # trace-time const
            # clamp so keep_prob ~ 1.0 cannot overflow the uint32 threshold to 0
            thresh = jnp.uint32(min(int(keep_prob * (2 ** 32)), 2 ** 32 - 1))
            # independent stream per (row-tile, ff-tile); callers must vary the
            # seed across layers / steps for independent masks.
            pltpu.prng_seed(seed_ref[0], pl.program_id(0), j)
            bits = pltpu.bitcast(pltpu.prng_random_bits(a1.shape), jnp.uint32)
            a1 = jnp.where(bits < thresh, a1 * inv_keep, 0.0)

    # linear_2 partial: acc += a1_j @ W2^T[j, :]  (bf16 operands, f32 accumulate)
    acc_ref[...] += jnp.dot(a1.astype(w2_ref.dtype), w2_ref[...],
                            preferred_element_type=jnp.float32)

    @pl.when(j == nj - 1)
    def _():
        o_ref[...] = (acc_ref[...] + b2_ref[...]).astype(o_ref.dtype)


class FeedForwardTPU:
    """Fused FFN: y = relu(x @ W1^T + b1) -> dropout -> @ W2^T + b2.

    Weight pad / transpose / bf16 cast happens ONCE at construction (hoisted
    out of the per-call hot path). PyTorch nn.Linear parameter shapes:
      w1: (ff, emb), b1: (ff,), w2: (emb, ff), b2: (emb,)."""

    def __init__(self, w1, b1, w2, b2, *, dropout_rate=0.2, tm=None, tf=512):
        w1 = jnp.asarray(w1); b1 = jnp.asarray(b1)
        w2 = jnp.asarray(w2); b2 = jnp.asarray(b2)
        ff, emb = w1.shape
        assert w2.shape == (emb, ff) and b1.shape == (ff,) and b2.shape == (emb,)
        self.emb, self.ff = emb, ff
        self.dropout_rate = float(dropout_rate)
        self._tm_req, self._tf_req = tm, tf

        # Padded layout depends only on (emb, ff, tf) -> precompute once.
        p0 = _plan(1, emb, ff, 4, tm=tm, tf=tf)
        emb_p, ff_p = p0["emb_p"], p0["ff_p"]
        self.emb_p, self.ff_p = emb_p, ff_p
        self.w1t = jnp.pad(w1.T, ((0, emb_p - emb), (0, ff_p - ff))).astype(jnp.bfloat16)
        self.w2t = jnp.pad(w2.T, ((0, ff_p - ff), (0, emb_p - emb))).astype(jnp.bfloat16)
        self.b1r = jnp.pad(b1, (0, ff_p - ff)).astype(jnp.float32).reshape(1, ff_p)
        self.b2r = jnp.pad(b2, (0, emb_p - emb)).astype(jnp.float32).reshape(1, emb_p)

    def __call__(self, x, *, training=False, seed=0):
        emb = self.emb
        assert x.shape[-1] == emb
        lead = x.shape[:-1]
        out_dtype = x.dtype
        out_itemsize = jnp.dtype(out_dtype).itemsize

        x2d = x.reshape(-1, emb)
        M = x2d.shape[0]

        p = _plan(M, emb, self.ff, out_itemsize, tm=self._tm_req, tf=self._tf_req)
        emb_p, ff_p = self.emb_p, self.ff_p
        tm, tf_eff, M_p, grid = p["tm"], p["tf"], p["M_p"], p["grid"]

        xb = jnp.pad(x2d, ((0, M_p - M), (0, emb_p - emb))).astype(jnp.bfloat16)
        seed_arr = jnp.array([seed], dtype=jnp.int32)

        # Resident weights never change block index: single-buffer them so a
        # useless second pipeline copy does not burn VMEM (key on v7x 64 MiB).
        w_mode = dict(pipeline_mode=pl.Buffered(1)) if p["resident"] else {}

        in_specs = [
            pl.BlockSpec((tm, emb_p), lambda i, j, s: (i, 0)),                 # x
            pl.BlockSpec((emb_p, tf_eff), lambda i, j, s: (0, j), **w_mode),   # W1^T
            pl.BlockSpec((1, tf_eff), lambda i, j, s: (0, j), **w_mode),       # b1
            pl.BlockSpec((tf_eff, emb_p), lambda i, j, s: (j, 0), **w_mode),   # W2^T
            pl.BlockSpec((1, emb_p), lambda i, j, s: (0, 0)),                  # b2
        ]

        flops = 4 * M_p * emb_p * ff_p                      # two matmuls
        weight_reads = 1 if p["resident"] else grid[0]
        bytes_accessed = (xb.size * 2
                          + M_p * emb_p * out_itemsize
                          + weight_reads * (self.w1t.size + self.w2t.size) * 2
                          + self.b1r.size * 4 + self.b2r.size * 4)

        kernel = functools.partial(_ffn_kernel,
                                   dropout_rate=self.dropout_rate,
                                   training=training)

        out2d_p = pl.pallas_call(
            kernel,
            out_shape=jax.ShapeDtypeStruct((M_p, emb_p), out_dtype),
            grid_spec=pltpu.PrefetchScalarGridSpec(
                num_scalar_prefetch=1,                      # seed lives in SMEM
                grid=grid,
                in_specs=in_specs,
                out_specs=pl.BlockSpec((tm, emb_p), lambda i, j, s: (i, 0)),
                scratch_shapes=[pltpu.VMEM((tm, emb_p), jnp.float32)],
            ),
            compiler_params=pltpu.CompilerParams(
                dimension_semantics=("parallel", "arbitrary"),
                vmem_limit_bytes=p["vmem_limit"]),
            cost_estimate=pl.CostEstimate(
                flops=int(flops), transcendentals=0,
                bytes_accessed=int(bytes_accessed)),
        )(seed_arr, xb, self.w1t, self.b1r, self.w2t, self.b2r)

        return out2d_p[:M, :emb].reshape(*lead, emb)


def feed_forward(x, w1, b1, w2, b2, *, dropout_rate=0.2, training=False,
                 seed=0, tm=None, tf=512):
    """One-shot convenience wrapper. Prefer constructing FeedForwardTPU once
    and reusing it so the weight pad/transpose/cast is not repeated per call."""
    mod = FeedForwardTPU(w1, b1, w2, b2, dropout_rate=dropout_rate, tm=tm, tf=tf)
    return mod(x, training=training, seed=seed)


if __name__ == "__main__":
    # small shapes implied by the module: (batch, seq, emb) with hidden ff_dim
    batch, seq, emb, ff = 2, 8, 32, 64

    key = jax.random.PRNGKey(0)
    kx, kw1, kb1, kw2, kb2 = jax.random.split(key, 5)

    x = jax.random.normal(kx, (batch, seq, emb), dtype=jnp.float32)
    # deterministic init mimicking nn.Linear's uniform(-1/sqrt(fan_in), +1/sqrt(fan_in))
    w1 = jax.random.uniform(kw1, (ff, emb), jnp.float32,
                            -1.0 / emb ** 0.5, 1.0 / emb ** 0.5)
    b1 = jax.random.uniform(kb1, (ff,), jnp.float32,
                            -1.0 / emb ** 0.5, 1.0 / emb ** 0.5)
    w2 = jax.random.uniform(kw2, (emb, ff), jnp.float32,
                            -1.0 / ff ** 0.5, 1.0 / ff ** 0.5)
    b2 = jax.random.uniform(kb2, (emb,), jnp.float32,
                            -1.0 / ff ** 0.5, 1.0 / ff ** 0.5)

    # Build once (weights prepped once), call in eval mode (dropout is identity,
    # exactly like nn.Dropout.eval()).
    ffn = FeedForwardTPU(w1, b1, w2, b2, dropout_rate=0.2)
    out = ffn(x, training=False)
    out = jax.block_until_ready(out)

    # reference in plain JAX using the same bf16-operand / f32-accumulate path
    xb = x.astype(jnp.bfloat16)
    z1 = jnp.einsum("bse,fe->bsf", xb, w1.astype(jnp.bfloat16),
                    preferred_element_type=jnp.float32) + b1
    a1 = jnp.maximum(z1, 0.0)
    ref = jnp.einsum("bsf,ef->bse", a1.astype(jnp.bfloat16),
                     w2.astype(jnp.bfloat16),
                     preferred_element_type=jnp.float32) + b2
    ref = ref.astype(x.dtype)

    assert out.shape == x.shape
    assert jnp.allclose(out, ref, atol=1e-2, rtol=1e-2), "mismatch vs reference"

    # TODO(synk): training-mode dropout uses the TPU hardware PRNG, so its mask
    # will not bit-match torch's RNG stream (statistically equivalent only).
    print("KERNEL_OK")
</pallas_src>

<mosaic_0001>
module attributes {stable_mosaic.version = 11 : i64} {
  func.func @_ffn_kernel(%arg0: i32, %arg1: i32, %arg2: memref<1xi32, #tpu.memory_space<smem>>, %arg3: memref<128x128xbf16, #tpu.memory_space<vmem>>, %arg4: memref<128x128xbf16, #tpu.memory_space<vmem>>, %arg5: memref<1x128xf32, #tpu.memory_space<vmem>>, %arg6: memref<128x128xbf16, #tpu.memory_space<vmem>>, %arg7: memref<1x128xf32, #tpu.memory_space<vmem>>, %arg8: memref<128x128xf32, #tpu.memory_space<vmem>>, %arg9: memref<128x128xf32, #tpu.memory_space<vmem>>) attributes {dimension_semantics = [#tpu.dimension_semantics<parallel>, #tpu.dimension_semantics<arbitrary>], iteration_bounds = array<i64: 1, 1>, scalar_prefetch = 1 : i64, scratch_operands = 1 : i64, tpu.core_type = #tpu.core_type<tc>, window_params = [{transform_indices = @transform_0, window_bounds = array<i64: 128, 128>}, {pipeline_mode = #tpu.pipeline_mode<synchronous>, transform_indices = @transform_1, window_bounds = array<i64: 128, 128>}, {pipeline_mode = #tpu.pipeline_mode<synchronous>, transform_indices = @transform_2, window_bounds = array<i64: 1, 128>}, {pipeline_mode = #tpu.pipeline_mode<synchronous>, transform_indices = @transform_3, window_bounds = array<i64: 128, 128>}, {pipeline_mode = #tpu.pipeline_mode<synchronous>, transform_indices = @transform_4, window_bounds = array<i64: 1, 128>}, {transform_indices = @transform_5, window_bounds = array<i64: 128, 128>}]} {
    %c0_i32 = arith.constant 0 : i32
    %0 = arith.cmpi eq, %arg1, %c0_i32 : i32
    %1 = arith.extui %0 : i1 to i32
    %c0_i32_0 = arith.constant 0 : i32
    %2 = arith.cmpi ne, %1, %c0_i32_0 : i32
    scf.if %2 {
      %cst_16 = arith.constant 0.000000e+00 : f32
      %20 = vector.broadcast %cst_16 : f32 to vector<128x128xf32>
      %c0_17 = arith.constant 0 : index
      %c0_18 = arith.constant 0 : index
      %21 = vector.load %arg9[%c0_17, %c0_18] : memref<128x128xf32, #tpu.memory_space<vmem>>, vector<128x128xf32>
      tpu.vector_store %arg9[%c0_17, %c0_18], %20 {strides = array<i32>} : memref<128x128xf32, #tpu.memory_space<vmem>>, vector<128x128xf32>,
    } else {
    }
    %c0 = arith.constant 0 : index
    %c0_1 = arith.constant 0 : index
    %3 = vector.load %arg3[%c0, %c0_1] : memref<128x128xbf16, #tpu.memory_space<vmem>>, vector<128x128xbf16>
    %c0_2 = arith.constant 0 : index
    %c0_3 = arith.constant 0 : index
    %4 = vector.load %arg4[%c0_2, %c0_3] : memref<128x128xbf16, #tpu.memory_space<vmem>>, vector<128x128xbf16>
    %cst = arith.constant dense<0.000000e+00> : vector<128x128xf32>
    %5 = tpu.matmul %3, %4, %cst {dimension_numbers = #tpu.dot_dimension_numbers<[1], [0], [0], [1], [0, 0, 1, 1], [], []>} : vector<128x128xbf16>, vector<128x128xbf16>, vector<128x128xf32> -> vector<128x128xf32>
    %c0_4 = arith.constant 0 : index
    %c0_5 = arith.constant 0 : index
    %6 = vector.load %arg5[%c0_4, %c0_5] : memref<1x128xf32, #tpu.memory_space<vmem>>, vector<1x128xf32>
    %7 = vector.broadcast %6 : vector<1x128xf32> to vector<128x128xf32>
    %8 = arith.addf %5, %7 : vector<128x128xf32>
    %cst_6 = arith.constant 0.000000e+00 : f32
    %9 = vector.broadcast %cst_6 : f32 to vector<128x128xf32>
    %10 = arith.maximumf %8, %9 : vector<128x128xf32>
    %c0_7 = arith.constant 0 : index
    %c0_8 = arith.constant 0 : index
    %11 = vector.load %arg9[%c0_7, %c0_8] : memref<128x128xf32, #tpu.memory_space<vmem>>, vector<128x128xf32>
    %12 = arith.truncf %10 : vector<128x128xf32> to vector<128x128xbf16>
    %c0_9 = arith.constant 0 : index
    %c0_10 = arith.constant 0 : index
    %13 = vector.load %arg6[%c0_9, %c0_10] : memref<128x128xbf16, #tpu.memory_space<vmem>>, vector<128x128xbf16>
    %cst_11 = arith.constant dense<0.000000e+00> : vector<128x128xf32>
    %14 = tpu.matmul %12, %13, %cst_11 {dimension_numbers = #tpu.dot_dimension_numbers<[1], [0], [0], [1], [0, 0, 1, 1], [], []>} : vector<128x128xbf16>, vector<128x128xbf16>, vector<128x128xf32> -> vector<128x128xf32>
    %15 = arith.addf %11, %14 : vector<128x128xf32>
    %c0_12 = arith.constant 0 : index
    %c0_13 = arith.constant 0 : index
    %16 = vector.load %arg9[%c0_12, %c0_13] : memref<128x128xf32, #tpu.memory_space<vmem>>, vector<128x128xf32>
    tpu.vector_store %arg9[%c0_12, %c0_13], %15 {strides = array<i32>} : memref<128x128xf32, #tpu.memory_space<vmem>>, vector<128x128xf32>,
    %c0_i32_14 = arith.constant 0 : i32
    %17 = arith.cmpi eq, %arg1, %c0_i32_14 : i32
    %18 = arith.extui %17 : i1 to i32
    %c0_i32_15 = arith.constant 0 : i32
    %19 = arith.cmpi ne, %18, %c0_i32_15 : i32
    scf.if %19 {
      %c0_16 = arith.constant 0 : index
      %c0_17 = arith.constant 0 : index
      %20 = vector.load %arg9[%c0_16, %c0_17] : memref<128x128xf32, #tpu.memory_space<vmem>>, vector<128x128xf32>
      %c0_18 = arith.constant 0 : index
      %c0_19 = arith.constant 0 : index
      %21 = vector.load %arg7[%c0_18, %c0_19] : memref<1x128xf32, #tpu.memory_space<vmem>>, vector<1x128xf32>
      %22 = vector.broadcast %21 : vector<1x128xf32> to vector<128x128xf32>
      %23 = arith.addf %20, %22 : vector<128x128xf32>
      %c0_20 = arith.constant 0 : index
      %c0_21 = arith.constant 0 : index
      %24 = vector.load %arg8[%c0_20, %c0_21] : memref<128x128xf32, #tpu.memory_space<vmem>>, vector<128x128xf32>
      tpu.vector_store %arg8[%c0_20, %c0_21], %23 {strides = array<i32>} : memref<128x128xf32, #tpu.memory_space<vmem>>, vector<128x128xf32>,
    } else {
    }
    return
  }
  func.func @transform_0(%arg0: i32, %arg1: i32, %arg2: memref<1xi32, #tpu.memory_space<smem>>) -> (i32, i32) {
    %c0_i32 = arith.constant 0 : i32
    %c0_i32_0 = arith.constant 0 : i32
    return %arg0, %c0_i32 : i32, i32
  }
  func.func @transform_1(%arg0: i32, %arg1: i32, %arg2: memref<1xi32, #tpu.memory_space<smem>>) -> (i32, i32) {
    %c0_i32 = arith.constant 0 : i32
    %c0_i32_0 = arith.constant 0 : i32
    return %c0_i32, %arg1 : i32, i32
  }
  func.func @transform_2(%arg0: i32, %arg1: i32, %arg2: memref<1xi32, #tpu.memory_space<smem>>) -> (i32, i32) {
    %c0_i32 = arith.constant 0 : i32
    %c0_i32_0 = arith.constant 0 : i32
    return %c0_i32, %arg1 : i32, i32
  }
  func.func @transform_3(%arg0: i32, %arg1: i32, %arg2: memref<1xi32, #tpu.memory_space<smem>>) -> (i32, i32) {
    %c0_i32 = arith.constant 0 : i32
    %c0_i32_0 = arith.constant 0 : i32
    return %arg1, %c0_i32 : i32, i32
  }
  func.func @transform_4(%arg0: i32, %arg1: i32, %arg2: memref<1xi32, #tpu.memory_space<smem>>) -> (i32, i32) {
    %c0_i32 = arith.constant 0 : i32
    %c0_i32_0 = arith.constant 0 : i32
    %c0_i32_1 = arith.constant 0 : i32
    return %c0_i32, %c0_i32_0 : i32, i32
  }
  func.func @transform_5(%arg0: i32, %arg1: i32, %arg2: memref<1xi32, #tpu.memory_space<smem>>) -> (i32, i32) {
    %c0_i32 = arith.constant 0 : i32
    %c0_i32_0 = arith.constant 0 : i32
    return %arg0, %c0_i32 : i32, i32
  }
}

</mosaic_0001>

<llo_original>
// kernel: tpu_custom_call.1
$region0: #{tpu_custom_call.1}
  #allocation0 [shape = 'u32[]', space=smem, size = 0x4, offset = 0x4, fixed_abs, tag = 'smem constant byte address 0x4 - core index']
  #allocation1 [shape = 'u32[144,128]{1,0:T(1,128)}', space=vmem, size = 0x12000, scoped, tag = 'internal scratch']
  #allocation2 [shape = 'f32[128,128]{1,0:T(8,128)}', space=vmem, size = 0x10000, scoped, tag = 'scratch operand']
  #allocation3 [shape = 's32[1]{0}', space=sflag, size = 0x4, scoped, tag = 'scoped memory for tpu_custom_call.1']
  #allocation4 [shape = 's32[1]{0:T(128)S(6)}', space=smem, size = 0x200, scoped, tag = 'prefetched SMEM operand 0']
  %s0 = inlined_call_operand.<no memory space> [shape: s32[1], index: 0, kind: input, shape index: {}]
  %s1 = inlined_call_operand.hbm [shape: bf16[128,128], index: 1, kind: input, shape index: {}]
  %s2 = inlined_call_operand.hbm [shape: bf16[128,128], index: 2, kind: input, shape index: {}]
  %s3 = inlined_call_operand.vmem [shape: f32[1,128], index: 3, kind: input, shape index: {}]
  %s4 = inlined_call_operand.hbm [shape: bf16[128,128], index: 4, kind: input, shape index: {}]
  %s5 = inlined_call_operand.vmem [shape: f32[1,128], index: 5, kind: input, shape index: {}]
  %s6 = inlined_call_operand.hbm [shape: f32[128,128], index: 6, kind: output, shape index: {}]
  %s7 = sld [smem:[#allocation0]]
  $region50: #{tpu_custom_call.1} parent=0
    _
  %s9 = ssub.s32 1, %s7
  %s10 = scalar_select 0, %s9, %s7
  %11 = sst [smem:[#allocation4]] %s0
  $region1: #{tpu_custom_call.1} parent=0
    #allocation5 [shape = 'u8[32768]{0}', space=vmem, size = 0x8000, scoped, tag = 'input window, operand 1, single buffered']
    #allocation6 [shape = 's32[1]{0}', space=sflag, size = 0x4, scoped, tag = 'scoped memory for tpu_custom_call.1']
    #allocation7 [shape = 's32[1]{0}', space=sflag, size = 0x4, scoped, tag = 'scoped memory for tpu_custom_call.1']
    #allocation8 [shape = 'u8[32768]{0}', space=vmem, size = 0x8000, scoped, tag = 'input window, operand 2, single buffered']
    #allocation9 [shape = 's32[1]{0}', space=sflag, size = 0x4, scoped, tag = 'scoped memory for tpu_custom_call.1']
    #allocation10 [shape = 'u8[32768]{0}', space=vmem, size = 0x8000, scoped, tag = 'input window, operand 4, single buffered']
    #allocation11 [shape = 'u8[65536]{0}', space=vmem, size = 0x10000, scoped, tag = 'output window, operand 0, single buffered']
    %12 = vsyncpa [#allocation6], 0
    %13 = vsyncpa [#allocation9], 0
    %14 = vsyncpa [#allocation7], 0
    // Predicated region
    $region2: #{tpu_custom_call.1} parent=1 // pred_check
      _
    $region3: #{tpu_custom_call.1} parent=1 // pred_check_branch
      %16 = sbr.rel (0) target = $region5
    $region4: #{tpu_custom_call.1} parent=1 // pred_region
      %s18 = ssub.s32 1024, 1024
      %19 = vsyncadd [#allocation6], %s18
      %s20 = sshll.u32 [#allocation5], 4
      %s21 = int_to_ptr.vmem [resolvable:$true] %s20
      %26 = dma.hbm_to_vmem [thread:$0]  %s1, 1024, %s21, [#allocation6], 64, 64, 4
    $region5: #{tpu_custom_call.1} parent=1 // pred_fallthru
      _
    // Predicated region
    $region6: #{tpu_custom_call.1} parent=1 // pred_check
      _
    $region7: #{tpu_custom_call.1} parent=1 // pred_check_branch
      %28 = sbr.rel (0) target = $region9
    $region8: #{tpu_custom_call.1} parent=1 // pred_region
      %s30 = ssub.s32 1024, 1024
      %31 = vsyncadd [#allocation9], %s30
      %s32 = sshll.u32 [#allocation8], 4
      %s33 = int_to_ptr.vmem [resolvable:$true] %s32
      %38 = dma.hbm_to_vmem [thread:$0]  %s2, 1024, %s33, [#allocation9], 64, 64, 4
    $region9: #{tpu_custom_call.1} parent=1 // pred_fallthru
      _
    // Predicated region
    $region10: #{tpu_custom_call.1} parent=1 // pred_check
      _
    $region11: #{tpu_custom_call.1} parent=1 // pred_check_branch
      %40 = sbr.rel (0) target = $region13
    $region12: #{tpu_custom_call.1} parent=1 // pred_region
      _
    $region13: #{tpu_custom_call.1} parent=1 // pred_fallthru
      _
    // Predicated region
    $region14: #{tpu_custom_call.1} parent=1 // pred_check
      _
    $region15: #{tpu_custom_call.1} parent=1 // pred_check_branch
      %42 = sbr.rel (0) target = $region17
    $region16: #{tpu_custom_call.1} parent=1 // pred_region
      %s44 = ssub.s32 1024, 1024
      %45 = vsyncadd [#allocation9], %s44
      %s46 = sshll.u32 [#allocation10], 4
      %s47 = int_to_ptr.vmem [resolvable:$true] %s46
      %52 = dma.hbm_to_vmem [thread:$0]  %s4, 1024, %s47, [#allocation9], 64, 64, 4
    $region17: #{tpu_custom_call.1} parent=1 // pred_fallthru
      _
    // Predicated region
    $region18: #{tpu_custom_call.1} parent=1 // pred_check
      _
    $region19: #{tpu_custom_call.1} parent=1 // pred_check_branch
      %54 = sbr.rel (0) target = $region21
    $region20: #{tpu_custom_call.1} parent=1 // pred_region
      _
    $region21: #{tpu_custom_call.1} parent=1 // pred_fallthru
      _
    // Predicated region
    $region22: #{tpu_custom_call.1} parent=1 // pred_check
      _
    $region23: #{tpu_custom_call.1} parent=1 // pred_check_branch
      %56 = sbr.rel (0) target = $region25
    $region24: #{tpu_custom_call.1} parent=1 // pred_region
      %57 = dma.done [#allocation6], 1024
    $region25: #{tpu_custom_call.1} parent=1 // pred_fallthru
      _
    // Predicated region
    $region26: #{tpu_custom_call.1} parent=1 // pred_check
      _
    $region27: #{tpu_custom_call.1} parent=1 // pred_check_branch
      %59 = sbr.rel (0) target = $region29
    $region28: #{tpu_custom_call.1} parent=1 // pred_region
      %60 = dma.done [#allocation9], 1024
    $region29: #{tpu_custom_call.1} parent=1 // pred_fallthru
      _
    // Predicated region
    $region30: #{tpu_custom_call.1} parent=1 // pred_check
      _
    $region31: #{tpu_custom_call.1} parent=1 // pred_check_branch
      %62 = sbr.rel (0) target = $region33
    $region32: #{tpu_custom_call.1} parent=1 // pred_region
      %63 = dma.done [#allocation9], 1024
    $region33: #{tpu_custom_call.1} parent=1 // pred_fallthru
      _
    %p65 = scmp.eq.s32.totalorder 0, 0
    // Predicated region
    $region34: #{tpu_custom_call.1} parent=1 // pred_check
      %p66 = pneg %p65
    $region35: #{tpu_custom_call.1} parent=1 // pred_check_branch
      %68 = sbr.rel (%p66) target = $region37
    $region36: #{tpu_custom_call.1} parent=1 // pred_region
      %69 = vst [vmem:[#allocation2] sm:$0xff] 0.0
      %70 = vst [vmem:[#allocation2 + $0x8] sm:$0xff] 0.0
      %71 = vst [vmem:[#allocation2 + $0x10] sm:$0xff] 0.0
      %72 = vst [vmem:[#allocation2 + $0x18] sm:$0xff] 0.0
      %73 = vst [vmem:[#allocation2 + $0x20] sm:$0xff] 0.0
      %74 = vst [vmem:[#allocation2 + $0x28] sm:$0xff] 0.0
      %75 = vst [vmem:[#allocation2 + $0x30] sm:$0xff] 0.0
      %76 = vst [vmem:[#allocation2 + $0x38] sm:$0xff] 0.0
      %77 = vst [vmem:[#allocation2 + $0x40] sm:$0xff] 0.0
      %78 = vst [vmem:[#allocation2 + $0x48] sm:$0xff] 0.0
      %79 = vst [vmem:[#allocation2 + $0x50] sm:$0xff] 0.0
      %80 = vst [vmem:[#allocation2 + $0x58] sm:$0xff] 0.0
      %81 = vst [vmem:[#allocation2 + $0x60] sm:$0xff] 0.0
      %82 = vst [vmem:[#allocation2 + $0x68] sm:$0xff] 0.0
      %83 = vst [vmem:[#allocation2 + $0x70] sm:$0xff] 0.0
      %84 = vst [vmem:[#allocation2 + $0x78] sm:$0xff] 0.0
    $region37: #{tpu_custom_call.1} parent=1 // pred_fallthru
      _
    %v85 = vld [vmem:[#allocation5] sm:$0xf]
    %v86 = vld [vmem:[#allocation5 + $0x4] sm:$0xf]
    %v87 = vld [vmem:[#allocation5 + $0x8] sm:$0xf]
    %v88 = vld [vmem:[#allocation5 + $0xc] sm:$0xf]
    %v89 = vld [vmem:[#allocation5 + $0x10] sm:$0xf]
    %v90 = vld [vmem:[#allocation5 + $0x14] sm:$0xf]
    %v91 = vld [vmem:[#allocation5 + $0x18] sm:$0xf]
    %v92 = vld [vmem:[#allocation5 + $0x1c] sm:$0xf]
    %v93 = vld [vmem:[#allocation5 + $0x20] sm:$0xf]
    %v94 = vld [vmem:[#allocation5 + $0x24] sm:$0xf]
    %v95 = vld [vmem:[#allocation5 + $0x28] sm:$0xf]
    %v96 = vld [vmem:[#allocation5 + $0x2c] sm:$0xf]
    %v97 = vld [vmem:[#allocation5 + $0x30] sm:$0xf]
    %v98 = vld [vmem:[#allocation5 + $0x34] sm:$0xf]
    %v99 = vld [vmem:[#allocation5 + $0x38] sm:$0xf]
    %v100 = vld [vmem:[#allocation5 + $0x3c] sm:$0xf]
    %v101 = vld [vmem:[#allocation8] sm:$0xf]
    %v102 = vld [vmem:[#allocation8 + $0x4] sm:$0xf]
    %v103 = vld [vmem:[#allocation8 + $0x8] sm:$0xf]
    %v104 = vld [vmem:[#allocation8 + $0xc] sm:$0xf]
    %v105 = vld [vmem:[#allocation8 + $0x10] sm:$0xf]
    %v106 = vld [vmem:[#allocation8 + $0x14] sm:$0xf]
    %v107 = vld [vmem:[#allocation8 + $0x18] sm:$0xf]
    %v108 = vld [vmem:[#allocation8 + $0x1c] sm:$0xf]
    %v109 = vld [vmem:[#allocation8 + $0x20] sm:$0xf]
    %v110 = vld [vmem:[#allocation8 + $0x24] sm:$0xf]
    %v111 = vld [vmem:[#allocation8 + $0x28] sm:$0xf]
    %v112 = vld [vmem:[#allocation8 + $0x2c] sm:$0xf]
    %v113 = vld [vmem:[#allocation8 + $0x30] sm:$0xf]
    %v114 = vld [vmem:[#allocation8 + $0x34] sm:$0xf]
    %v115 = vld [vmem:[#allocation8 + $0x38] sm:$0xf]
    %v116 = vld [vmem:[#allocation8 + $0x3c] sm:$0xf]
    %v117 = vld [vmem:[%s3] sm:$0x1]
    %v119 = vlaneseq
    %v120 = vshrl.u32 %v119, 7
    %v121 = vsub.s32 0, %v120
    %v122 = vrot.slane %v117, %v121
    %v140 = vunpack.c.l.b16 %v85
    %v141 = vunpack.c.l.b16 %v86
    %v142 = vunpack.c.l.b16 %v87
    %v143 = vunpack.c.l.b16 %v88
    %v144 = vunpack.c.l.b16 %v89
    %v145 = vunpack.c.l.b16 %v90
    %v146 = vunpack.c.l.b16 %v91
    %v147 = vunpack.c.l.b16 %v92
    %v148 = vunpack.c.l.b16 %v93
    %v149 = vunpack.c.l.b16 %v94
    %v150 = vunpack.c.l.b16 %v95
    %v151 = vunpack.c.l.b16 %v96
    %v152 = vunpack.c.l.b16 %v97
    %v153 = vunpack.c.l.b16 %v98
    %v154 = vunpack.c.l.b16 %v99
    %v155 = vunpack.c.l.b16 %v100
    %v156 = vpack.c.b16 %v141, %v140
    %v157 = vpack.c.b16 %v143, %v142
    %v158 = vpack.c.b16 %v145, %v144
    %v159 = vpack.c.b16 %v147, %v146
    %v160 = vpack.c.b16 %v149, %v148
    %v161 = vpack.c.b16 %v151, %v150
    %v162 = vpack.c.b16 %v153, %v152
    %v163 = vpack.c.b16 %v155, %v154
    %v188 = vunpack.c.l.b16 %v101
    %v189 = vunpack.c.l.b16 %v102
    %v190 = vunpack.c.l.b16 %v103
    %v191 = vunpack.c.l.b16 %v104
    %v192 = vunpack.c.l.b16 %v105
    %v193 = vunpack.c.l.b16 %v106
    %v194 = vunpack.c.l.b16 %v107
    %v195 = vunpack.c.l.b16 %v108
    %v196 = vunpack.c.l.b16 %v109
    %v197 = vunpack.c.l.b16 %v110
    %v198 = vunpack.c.l.b16 %v111
    %v199 = vunpack.c.l.b16 %v112
    %v200 = vunpack.c.l.b16 %v113
    %v201 = vunpack.c.l.b16 %v114
    %v202 = vunpack.c.l.b16 %v115
    %v203 = vunpack.c.l.b16 %v116
    %v204 = vpack.c.b16 %v189, %v188
    %v205 = vpack.c.b16 %v191, %v190
    %v206 = vpack.c.b16 %v193, %v192
    %v207 = vpack.c.b16 %v195, %v194
    %v208 = vpack.c.b16 %v197, %v196
    %v209 = vpack.c.b16 %v199, %v198
    %v210 = vpack.c.b16 %v201, %v200
    %v211 = vpack.c.b16 %v203, %v202
    %220 = vmatprep.subr.bf16.mxu0 0
    %221 = vmatpush1.bf16.msra.mxu0 %v211
    %222 = vmatprep.subr.bf16.mxu0 0
    %223 = vmatpush1.bf16.msra.mxu0 %v210
    %224 = vmatprep.subr.bf16.mxu0 0
    %225 = vmatpush1.bf16.msra.mxu0 %v209
    %226 = vmatprep.subr.bf16.mxu0 0
    %227 = vmatpush1.bf16.msra.mxu0 %v208
    %228 = vmatprep.subr.bf16.mxu0 0
    %229 = vmatpush1.bf16.msra.mxu0 %v207
    %230 = vmatprep.subr.bf16.mxu0 0
    %231 = vmatpush1.bf16.msra.mxu0 %v206
    %232 = vmatprep.subr.bf16.mxu0 0
    %233 = vmatpush1.bf16.msra.mxu0 %v205
    %234 = vmatprep.subr.bf16.mxu0 0
    %235 = vmatpush1.bf16.msra.mxu0 %v204
    %236 = vmatprep.subr.bf16.mxu0 0
    %237 = vmatpush2.bf16.msra.mxu0 0
    %238 = vmatprep.subr.bf16.mxu0 0
    %239 = vmatpush2.bf16.msra.mxu0 0
    %240 = vmatprep.subr.bf16.mxu0 0
    %241 = vmatpush2.bf16.msra.mxu0 0
    %242 = vmatprep.subr.bf16.mxu0 0
    %243 = vmatpush2.bf16.msra.mxu0 0
    %244 = vmatprep.subr.bf16.mxu0 0
    %245 = vmatpush2.bf16.msra.mxu0 0
    %246 = vmatprep.subr.bf16.mxu0 0
    %247 = vmatpush2.bf16.msra.mxu0 0
    %248 = vmatprep.subr.bf16.mxu0 0
    %249 = vmatpush2.bf16.msra.mxu0 0
    %250 = vmatprep.subr.bf16.mxu0 0
    %251 = vmatpush2.bf16.msra.mxu0 0
    %252 = vmatprep.mubr.bf16.mxu0 0
    %253 = vmatmul.mubr.bf16.gmra.mxu0 %v156
    %v254 = vpop.f32.mrf.mxu0
    %v255 = vadd.f32 %v122, %v254
    %v256 = vpop.f32.mrf.mxu0
    %v257 = vpop.f32.mrf.mxu0
    %v258 = vadd.f32 %v122, %v257
    %v259 = vpop.f32.mrf.mxu0
    %260 = vmatprep.mubr.bf16.mxu0 0
    %261 = vmatmul.mubr.bf16.gmra.mxu0 %v157
    %v262 = vpop.f32.mrf.mxu0
    %v263 = vadd.f32 %v122, %v262
    %v264 = vpop.f32.mrf.mxu0
    %v265 = vpop.f32.mrf.mxu0
    %v266 = vadd.f32 %v122, %v265
    %v267 = vpop.f32.mrf.mxu0
    %268 = vmatprep.mubr.bf16.mxu0 0
    %269 = vmatmul.mubr.bf16.gmra.mxu0 %v158
    %v270 = vpop.f32.mrf.mxu0
    %v271 = vadd.f32 %v122, %v270
    %v272 = vpop.f32.mrf.mxu0
    %v273 = vpop.f32.mrf.mxu0
    %v274 = vadd.f32 %v122, %v273
    %v275 = vpop.f32.mrf.mxu0
    %276 = vmatprep.mubr.bf16.mxu0 0
    %277 = vmatmul.mubr.bf16.gmra.mxu0 %v159
    %v278 = vpop.f32.mrf.mxu0
    %v279 = vadd.f32 %v122, %v278
    %v280 = vpop.f32.mrf.mxu0
    %v281 = vpop.f32.mrf.mxu0
    %v282 = vadd.f32 %v122, %v281
    %v283 = vpop.f32.mrf.mxu0
    %284 = vmatprep.mubr.bf16.mxu0 0
    %285 = vmatmul.mubr.bf16.gmra.mxu0 %v160
    %v286 = vpop.f32.mrf.mxu0
    %v287 = vadd.f32 %v122, %v286
    %v288 = vpop.f32.mrf.mxu0
    %v289 = vpop.f32.mrf.mxu0
    %v290 = vadd.f32 %v122, %v289
    %v291 = vpop.f32.mrf.mxu0
    %292 = vmatprep.mubr.bf16.mxu0 0
    %293 = vmatmul.mubr.bf16.gmra.mxu0 %v161
    %v294 = vpop.f32.mrf.mxu0
    %v295 = vadd.f32 %v122, %v294
    %v296 = vpop.f32.mrf.mxu0
    %v297 = vpop.f32.mrf.mxu0
    %v298 = vadd.f32 %v122, %v297
    %v299 = vpop.f32.mrf.mxu0
    %300 = vmatprep.mubr.bf16.mxu0 0
    %301 = vmatmul.mubr.bf16.gmra.mxu0 %v162
    %v302 = vpop.f32.mrf.mxu0
    %v303 = vadd.f32 %v122, %v302
    %v304 = vpop.f32.mrf.mxu0
    %v305 = vpop.f32.mrf.mxu0
    %v306 = vadd.f32 %v122, %v305
    %v307 = vpop.f32.mrf.mxu0
    %308 = vmatprep.mubr.bf16.mxu0 0
    %309 = vmatmul.mubr.bf16.gmra.mxu0 %v163
    %v310 = vpop.f32.mrf.mxu0
    %v311 = vadd.f32 %v122, %v310
    %v312 = vpop.f32.mrf.mxu0
    %v313 = vpop.f32.mrf.mxu0
    %v314 = vadd.f32 %v122, %v313
    %v315 = vpop.f32.mrf.mxu0
    %316 = vdwg.mxu0
    %v317 = vmax.f32 %v255, 0.0
    %v318 = vmax.f32 %v258, 0.0
    %v319 = vmax.f32 %v263, 0.0
    %v320 = vmax.f32 %v266, 0.0
    %v321 = vmax.f32 %v271, 0.0
    %v322 = vmax.f32 %v274, 0.0
    %v323 = vmax.f32 %v279, 0.0
    %v324 = vmax.f32 %v282, 0.0
    %v325 = vmax.f32 %v287, 0.0
    %v326 = vmax.f32 %v290, 0.0
    %v327 = vmax.f32 %v295, 0.0
    %v328 = vmax.f32 %v298, 0.0
    %v329 = vmax.f32 %v303, 0.0
    %v330 = vmax.f32 %v306, 0.0
    %v331 = vmax.f32 %v311, 0.0
    %v332 = vmax.f32 %v314, 0.0
    %v333 = vld [vmem:[#allocation2] sm:$0xff]
    %v334 = vld [vmem:[#allocation2 + $0x8] sm:$0xff]
    %v335 = vld [vmem:[#allocation2 + $0x10] sm:$0xff]
    %v336 = vld [vmem:[#allocation2 + $0x18] sm:$0xff]
    %v337 = vld [vmem:[#allocation2 + $0x20] sm:$0xff]
    %v338 = vld [vmem:[#allocation2 + $0x28] sm:$0xff]
    %v339 = vld [vmem:[#allocation2 + $0x30] sm:$0xff]
    %v340 = vld [vmem:[#allocation2 + $0x38] sm:$0xff]
    %v341 = vld [vmem:[#allocation2 + $0x40] sm:$0xff]
    %v342 = vld [vmem:[#allocation2 + $0x48] sm:$0xff]
    %v343 = vld [vmem:[#allocation2 + $0x50] sm:$0xff]
    %v344 = vld [vmem:[#allocation2 + $0x58] sm:$0xff]
    %v345 = vld [vmem:[#allocation2 + $0x60] sm:$0xff]
    %v346 = vld [vmem:[#allocation2 + $0x68] sm:$0xff]
    %v347 = vld [vmem:[#allocation2 + $0x70] sm:$0xff]
    %v348 = vld [vmem:[#allocation2 + $0x78] sm:$0xff]
    %v349 = vpack.c.bf16 %v318, %v317
    %v350 = vpack.c.bf16 %v320, %v319
    %v351 = vpack.c.bf16 %v322, %v321
    %v352 = vpack.c.bf16 %v324, %v323
    %v353 = vpack.c.bf16 %v326, %v325
    %v354 = vpack.c.bf16 %v328, %v327
    %v355 = vpack.c.bf16 %v330, %v329
    %v356 = vpack.c.bf16 %v332, %v331
    %v357 = vld [vmem:[#allocation10] sm:$0xf]
    %v358 = vld [vmem:[#allocation10 + $0x4] sm:$0xf]
    %v359 = vld [vmem:[#allocation10 + $0x8] sm:$0xf]
    %v360 = vld [vmem:[#allocation10 + $0xc] sm:$0xf]
    %v361 = vld [vmem:[#allocation10 + $0x10] sm:$0xf]
    %v362 = vld [vmem:[#allocation10 + $0x14] sm:$0xf]
    %v363 = vld [vmem:[#allocation10 + $0x18] sm:$0xf]
    %v364 = vld [vmem:[#allocation10 + $0x1c] sm:$0xf]
    %v365 = vld [vmem:[#allocation10 + $0x20] sm:$0xf]
    %v366 = vld [vmem:[#allocation10 + $0x24] sm:$0xf]
    %v367 = vld [vmem:[#allocation10 + $0x28] sm:$0xf]
    %v368 = vld [vmem:[#allocation10 + $0x2c] sm:$0xf]
    %v369 = vld [vmem:[#allocation10 + $0x30] sm:$0xf]
    %v370 = vld [vmem:[#allocation10 + $0x34] sm:$0xf]
    %v371 = vld [vmem:[#allocation10 + $0x38] sm:$0xf]
    %v372 = vld [vmem:[#allocation10 + $0x3c] sm:$0xf]
    %v389 = vunpack.c.l.b16 %v357
    %v390 = vunpack.c.l.b16 %v358
    %v391 = vunpack.c.l.b16 %v359
    %v392 = vunpack.c.l.b16 %v360
    %v393 = vunpack.c.l.b16 %v361
    %v394 = vunpack.c.l.b16 %v362
    %v395 = vunpack.c.l.b16 %v363
    %v396 = vunpack.c.l.b16 %v364
    %v397 = vunpack.c.l.b16 %v365
    %v398 = vunpack.c.l.b16 %v366
    %v399 = vunpack.c.l.b16 %v367
    %v400 = vunpack.c.l.b16 %v368
    %v401 = vunpack.c.l.b16 %v369
    %v402 = vunpack.c.l.b16 %v370
    %v403 = vunpack.c.l.b16 %v371
    %v404 = vunpack.c.l.b16 %v372
    %v405 = vpack.c.b16 %v390, %v389
    %v406 = vpack.c.b16 %v392, %v391
    %v407 = vpack.c.b16 %v394, %v393
    %v408 = vpack.c.b16 %v396, %v395
    %v409 = vpack.c.b16 %v398, %v397
    %v410 = vpack.c.b16 %v400, %v399
    %v411 = vpack.c.b16 %v402, %v401
    %v412 = vpack.c.b16 %v404, %v403
    %421 = vmatprep.subr.bf16.mxu0 0
    %422 = vmatpush1.bf16.msra.mxu0 %v412
    %423 = vmatprep.subr.bf16.mxu0 0
    %424 = vmatpush1.bf16.msra.mxu0 %v411
    %425 = vmatprep.subr.bf16.mxu0 0
    %426 = vmatpush1.bf16.msra.mxu0 %v410
    %427 = vmatprep.subr.bf16.mxu0 0
    %428 = vmatpush1.bf16.msra.mxu0 %v409
    %429 = vmatprep.subr.bf16.mxu0 0
    %430 = vmatpush1.bf16.msra.mxu0 %v408
    %431 = vmatprep.subr.bf16.mxu0 0
    %432 = vmatpush1.bf16.msra.mxu0 %v407
    %433 = vmatprep.subr.bf16.mxu0 0
    %434 = vmatpush1.bf16.msra.mxu0 %v406
    %435 = vmatprep.subr.bf16.mxu0 0
    %436 = vmatpush1.bf16.msra.mxu0 %v405
    %437 = vmatprep.subr.bf16.mxu0 0
    %438 = vmatpush2.bf16.msra.mxu0 0
    %439 = vmatprep.subr.bf16.mxu0 0
    %440 = vmatpush2.bf16.msra.mxu0 0
    %441 = vmatprep.subr.bf16.mxu0 0
    %442 = vmatpush2.bf16.msra.mxu0 0
    %443 = vmatprep.subr.bf16.mxu0 0
    %444 = vmatpush2.bf16.msra.mxu0 0
    %445 = vmatprep.subr.bf16.mxu0 0
    %446 = vmatpush2.bf16.msra.mxu0 0
    %447 = vmatprep.subr.bf16.mxu0 0
    %448 = vmatpush2.bf16.msra.mxu0 0
    %449 = vmatprep.subr.bf16.mxu0 0
    %450 = vmatpush2.bf16.msra.mxu0 0
    %451 = vmatprep.subr.bf16.mxu0 0
    %452 = vmatpush2.bf16.msra.mxu0 0
    %453 = vmatprep.mubr.bf16.mxu0 0
    %454 = vmatmul.mubr.bf16.gmra.mxu0 %v349
    %v455 = vpop.f32.mrf.mxu0
    %v456 = vadd.f32 0.0, %v455
    %v457 = vpop.f32.mrf.mxu0
    %v458 = vpop.f32.mrf.mxu0
    %v459 = vadd.f32 0.0, %v458
    %v460 = vpop.f32.mrf.mxu0
    %461 = vmatprep.mubr.bf16.mxu0 0
    %462 = vmatmul.mubr.bf16.gmra.mxu0 %v350
    %v463 = vpop.f32.mrf.mxu0
    %v464 = vadd.f32 0.0, %v463
    %v465 = vpop.f32.mrf.mxu0
    %v466 = vpop.f32.mrf.mxu0
    %v467 = vadd.f32 0.0, %v466
    %v468 = vpop.f32.mrf.mxu0
    %469 = vmatprep.mubr.bf16.mxu0 0
    %470 = vmatmul.mubr.bf16.gmra.mxu0 %v351
    %v471 = vpop.f32.mrf.mxu0
    %v472 = vadd.f32 0.0, %v471
    %v473 = vpop.f32.mrf.mxu0
    %v474 = vpop.f32.mrf.mxu0
    %v475 = vadd.f32 0.0, %v474
    %v476 = vpop.f32.mrf.mxu0
    %477 = vmatprep.mubr.bf16.mxu0 0
    %478 = vmatmul.mubr.bf16.gmra.mxu0 %v352
    %v479 = vpop.f32.mrf.mxu0
    %v480 = vadd.f32 0.0, %v479
    %v481 = vpop.f32.mrf.mxu0
    %v482 = vpop.f32.mrf.mxu0
    %v483 = vadd.f32 0.0, %v482
    %v484 = vpop.f32.mrf.mxu0
    %485 = vmatprep.mubr.bf16.mxu0 0
    %486 = vmatmul.mubr.bf16.gmra.mxu0 %v353
    %v487 = vpop.f32.mrf.mxu0
    %v488 = vadd.f32 0.0, %v487
    %v489 = vpop.f32.mrf.mxu0
    %v490 = vpop.f32.mrf.mxu0
    %v491 = vadd.f32 0.0, %v490
    %v492 = vpop.f32.mrf.mxu0
    %493 = vmatprep.mubr.bf16.mxu0 0
    %494 = vmatmul.mubr.bf16.gmra.mxu0 %v354
    %v495 = vpop.f32.mrf.mxu0
    %v496 = vadd.f32 0.0, %v495
    %v497 = vpop.f32.mrf.mxu0
    %v498 = vpop.f32.mrf.mxu0
    %v499 = vadd.f32 0.0, %v498
    %v500 = vpop.f32.mrf.mxu0
    %501 = vmatprep.mubr.bf16.mxu0 0
    %502 = vmatmul.mubr.bf16.gmra.mxu0 %v355
    %v503 = vpop.f32.mrf.mxu0
    %v504 = vadd.f32 0.0, %v503
    %v505 = vpop.f32.mrf.mxu0
    %v506 = vpop.f32.mrf.mxu0
    %v507 = vadd.f32 0.0, %v506
    %v508 = vpop.f32.mrf.mxu0
    %509 = vmatprep.mubr.bf16.mxu0 0
    %510 = vmatmul.mubr.bf16.gmra.mxu0 %v356
    %v511 = vpop.f32.mrf.mxu0
    %v512 = vadd.f32 0.0, %v511
    %v513 = vpop.f32.mrf.mxu0
    %v514 = vpop.f32.mrf.mxu0
    %v515 = vadd.f32 0.0, %v514
    %v516 = vpop.f32.mrf.mxu0
    %517 = vdwg.mxu0
    %v518 = vadd.f32 %v333, %v456
    %v519 = vadd.f32 %v334, %v459
    %v520 = vadd.f32 %v335, %v464
    %v521 = vadd.f32 %v336, %v467
    %v522 = vadd.f32 %v337, %v472
    %v523 = vadd.f32 %v338, %v475
    %v524 = vadd.f32 %v339, %v480
    %v525 = vadd.f32 %v340, %v483
    %v526 = vadd.f32 %v341, %v488
    %v527 = vadd.f32 %v342, %v491
    %v528 = vadd.f32 %v343, %v496
    %v529 = vadd.f32 %v344, %v499
    %v530 = vadd.f32 %v345, %v504
    %v531 = vadd.f32 %v346, %v507
    %v532 = vadd.f32 %v347, %v512
    %v533 = vadd.f32 %v348, %v515
    %534 = vst [vmem:[#allocation2] sm:$0xff] %v518
    %535 = vst [vmem:[#allocation2 + $0x8] sm:$0xff] %v519
    %536 = vst [vmem:[#allocation2 + $0x10] sm:$0xff] %v520
    %537 = vst [vmem:[#allocation2 + $0x18] sm:$0xff] %v521
    %538 = vst [vmem:[#allocation2 + $0x20] sm:$0xff] %v522
    %539 = vst [vmem:[#allocation2 + $0x28] sm:$0xff] %v523
    %540 = vst [vmem:[#allocation2 + $0x30] sm:$0xff] %v524
    %541 = vst [vmem:[#allocation2 + $0x38] sm:$0xff] %v525
    %542 = vst [vmem:[#allocation2 + $0x40] sm:$0xff] %v526
    %543 = vst [vmem:[#allocation2 + $0x48] sm:$0xff] %v527
    %544 = vst [vmem:[#allocation2 + $0x50] sm:$0xff] %v528
    %545 = vst [vmem:[#allocation2 + $0x58] sm:$0xff] %v529
    %546 = vst [vmem:[#allocation2 + $0x60] sm:$0xff] %v530
    %547 = vst [vmem:[#allocation2 + $0x68] sm:$0xff] %v531
    %548 = vst [vmem:[#allocation2 + $0x70] sm:$0xff] %v532
    %549 = vst [vmem:[#allocation2 + $0x78] sm:$0xff] %v533
    // Predicated region
    $region38: #{tpu_custom_call.1} parent=1 // pred_check
      %p550 = pneg %p65
    $region39: #{tpu_custom_call.1} parent=1 // pred_check_branch
      %552 = sbr.rel (%p550) target = $region41
    $region40: #{tpu_custom_call.1} parent=1 // pred_region
      %v553 = vld [vmem:[#allocation2] sm:$0xff]
      %v554 = vld [vmem:[#allocation2 + $0x8] sm:$0xff]
      %v555 = vld [vmem:[#allocation2 + $0x10] sm:$0xff]
      %v556 = vld [vmem:[#allocation2 + $0x18] sm:$0xff]
      %v557 = vld [vmem:[#allocation2 + $0x20] sm:$0xff]
      %v558 = vld [vmem:[#allocation2 + $0x28] sm:$0xff]
      %v559 = vld [vmem:[#allocation2 + $0x30] sm:$0xff]
      %v560 = vld [vmem:[#allocation2 + $0x38] sm:$0xff]
      %v561 = vld [vmem:[#allocation2 + $0x40] sm:$0xff]
      %v562 = vld [vmem:[#allocation2 + $0x48] sm:$0xff]
      %v563 = vld [vmem:[#allocation2 + $0x50] sm:$0xff]
      %v564 = vld [vmem:[#allocation2 + $0x58] sm:$0xff]
      %v565 = vld [vmem:[#allocation2 + $0x60] sm:$0xff]
      %v566 = vld [vmem:[#allocation2 + $0x68] sm:$0xff]
      %v567 = vld [vmem:[#allocation2 + $0x70] sm:$0xff]
      %v568 = vld [vmem:[#allocation2 + $0x78] sm:$0xff]
      %v569 = vld [vmem:[%s5] sm:$0x1]
      %v571 = vlaneseq
      %v572 = vshrl.u32 %v571, 7
      %v573 = vsub.s32 0, %v572
      %v574 = vrot.slane %v569, %v573
      %v576 = vadd.f32 %v553, %v574
      %v577 = vadd.f32 %v554, %v574
      %v578 = vadd.f32 %v555, %v574
      %v579 = vadd.f32 %v556, %v574
      %v580 = vadd.f32 %v557, %v574
      %v581 = vadd.f32 %v558, %v574
      %v582 = vadd.f32 %v559, %v574
      %v583 = vadd.f32 %v560, %v574
      %v584 = vadd.f32 %v561, %v574
      %v585 = vadd.f32 %v562, %v574
      %v586 = vadd.f32 %v563, %v574
      %v587 = vadd.f32 %v564, %v574
      %v588 = vadd.f32 %v565, %v574
      %v589 = vadd.f32 %v566, %v574
      %v590 = vadd.f32 %v567, %v574
      %v591 = vadd.f32 %v568, %v574
      %592 = vst [vmem:[#allocation11] sm:$0xff] %v576
      %593 = vst [vmem:[#allocation11 + $0x8] sm:$0xff] %v577
      %594 = vst [vmem:[#allocation11 + $0x10] sm:$0xff] %v578
      %595 = vst [vmem:[#allocation11 + $0x18] sm:$0xff] %v579
      %596 = vst [vmem:[#allocation11 + $0x20] sm:$0xff] %v580
      %597 = vst [vmem:[#allocation11 + $0x28] sm:$0xff] %v581
      %598 = vst [vmem:[#allocation11 + $0x30] sm:$0xff] %v582
      %599 = vst [vmem:[#allocation11 + $0x38] sm:$0xff] %v583
      %600 = vst [vmem:[#allocation11 + $0x40] sm:$0xff] %v584
      %601 = vst [vmem:[#allocation11 + $0x48] sm:$0xff] %v585
      %602 = vst [vmem:[#allocation11 + $0x50] sm:$0xff] %v586
      %603 = vst [vmem:[#allocation11 + $0x58] sm:$0xff] %v587
      %604 = vst [vmem:[#allocation11 + $0x60] sm:$0xff] %v588
      %605 = vst [vmem:[#allocation11 + $0x68] sm:$0xff] %v589
      %606 = vst [vmem:[#allocation11 + $0x70] sm:$0xff] %v590
      %607 = vst [vmem:[#allocation11 + $0x78] sm:$0xff] %v591
    $region41: #{tpu_custom_call.1} parent=1 // pred_fallthru
      _
    // Predicated region
    $region42: #{tpu_custom_call.1} parent=1 // pred_check
      _
    $region43: #{tpu_custom_call.1} parent=1 // pred_check_branch
      %609 = sbr.rel (0) target = $region45
    $region44: #{tpu_custom_call.1} parent=1 // pred_region
      %s611 = ssub.s32 2048, 2048
      %612 = vsyncadd [#allocation7], %s611
      %s613 = sshll.u32 [#allocation11], 4
      %s614 = int_to_ptr.vmem [resolvable:$true] %s613
      %619 = dma.vmem_to_hbm [thread:$0]  %s614, 2048, %s6, [#allocation7], 128, 128, 8
    $region45: #{tpu_custom_call.1} parent=1 // pred_fallthru
      _
    // Predicated region
    $region46: #{tpu_custom_call.1} parent=1 // pred_check
      _
    $region47: #{tpu_custom_call.1} parent=1 // pred_check_branch
      %621 = sbr.rel (0) target = $region49
    $region48: #{tpu_custom_call.1} parent=1 // pred_region
      %622 = dma.done [#allocation7], 2048
    $region49: #{tpu_custom_call.1} parent=1 // pred_fallthru
      _
    %623 = vsyncpa [#allocation6], 1
    %624 = vsyncpa [#allocation9], 1
    %625 = vsyncpa [#allocation7], 1

</llo_original>
